<compile_context>
chip_gen: v6e
topology: v6e:2x2x1
jax: 0.10.0
libtpu: 0.0.40
codegen_flags: <defaults>
</compile_context>

<pallas_src>
import jax
import jax.numpy as jnp
from jax.experimental import pallas as pl
from jax.experimental.pallas import tpu as pltpu


def bernoulli_encoder_kernel(x_ref, w_ref, cw2_ref, const_ref, out_ref):
    # x_ref:     (1, tm)  f32 — tile of flattened inputs along the lane axis
    # w_ref:     (N, 1)   f32 — inv_sigmas
    # cw2_ref:   (N, 1)   f32 — 2 * cs * inv_sigmas
    # const_ref: (N, 1)   f32 — -cs^2 * inv_sigmas + log(As)
    # out_ref:   (N, tm)  f32 — logits, lane-dense
    x = x_ref[...]                                  # (1, tm)
    out_ref[...] = (const_ref[...]
                    + cw2_ref[...] * x
                    - w_ref[...] * (x * x)).astype(out_ref.dtype)


def bernoulli_encoder(x, cs, log_sigmas, As, *, tm=None):
    """x: (..., 1) or (...,) scalars; cs/log_sigmas/As: (1, N). Returns (..., N) logits."""
    x = jnp.asarray(x, jnp.float32)
    cs = jnp.asarray(cs, jnp.float32).reshape(-1)
    log_sigmas = jnp.asarray(log_sigmas, jnp.float32).reshape(-1)
    As = jnp.asarray(As, jnp.float32).reshape(-1)
    N = cs.shape[0]

    if x.ndim >= 2 and x.shape[-1] == 1:
        batch_shape = x.shape[:-1]
    else:
        batch_shape = x.shape
    M = 1
    for d in batch_shape:
        M *= int(d)

    # Per-component coefficients (tiny, done once per call in the wrapper).
    inv_sigmas = 0.5 * jnp.exp(-2.0 * log_sigmas)                     # (N,)
    w = inv_sigmas.reshape(N, 1)
    cw2 = (2.0 * cs * inv_sigmas).reshape(N, 1)
    const = (-(cs ** 2) * inv_sigmas + jnp.log(As)).reshape(N, 1)

    # Tile sizing: lane-dense, biggest that keeps the double-buffered output
    # tile around ~4 MiB (well inside the default scoped VMEM on v5e/v6e/v7x).
    if tm is None:
        budget = 4 * 1024 * 1024
        tm = max(128, min(8192, (budget // (N * 4)) // 128 * 128))
    if M <= tm:
        tm_eff, M_pad = M, M          # one step; blocks == full array dims
    else:
        tm_eff = tm                    # multiple of 128 -> unmasked stores
        M_pad = pl.cdiv(M, tm_eff) * tm_eff

    x_flat = x.reshape(1, M)
    if M_pad != M:
        x_flat = jnp.pad(x_flat, ((0, 0), (0, M_pad - M)))

    grid = (M_pad // tm_eff,)
    out = pl.pallas_call(
        bernoulli_encoder_kernel,
        out_shape=jax.ShapeDtypeStruct((N, M_pad), jnp.float32),
        grid_spec=pltpu.PrefetchScalarGridSpec(
            num_scalar_prefetch=0,
            grid=grid,
            in_specs=[
                pl.BlockSpec((1, tm_eff), lambda i: (0, i)),   # x tile (lane-dense)
                pl.BlockSpec((N, 1), lambda i: (0, 0)),        # inv_sigmas (resident)
                pl.BlockSpec((N, 1), lambda i: (0, 0)),        # 2*c*inv_sigma (resident)
                pl.BlockSpec((N, 1), lambda i: (0, 0)),        # const (resident)
            ],
            out_specs=pl.BlockSpec((N, tm_eff), lambda i: (0, i)),
        ),
        compiler_params=pltpu.CompilerParams(
            dimension_semantics=("parallel",)),
    )(x_flat, w, cw2, const)

    return out[:, :M].T.reshape(batch_shape + (N,))


if __name__ == "__main__":
    # Small shapes consistent with the module: x is (batch, seq, 1) scalars,
    # N Bernoulli components.
    B, T, N = 2, 8, 16
    x_min, x_max = -3.0, 3.0

    key = jax.random.PRNGKey(0)
    k_x, k_c = jax.random.split(key)

    x = jax.random.normal(k_x, (B, T, 1), dtype=jnp.float32)
    # Deterministic parameter init matching initialize_bernoulli_params shapes.
    # TODO(synk): the sklearn-KMeans center initialization is host-side setup,
    # not part of the forward pass; random centers are used here instead.
    cs = jax.random.uniform(k_c, (1, N), minval=x_min, maxval=x_max,
                            dtype=jnp.float32)
    log_sigmas = jnp.log(jnp.ones((1, N), jnp.float32) * (x_max - x_min) / N)
    As = jnp.ones((1, N), jnp.float32)

    logits = bernoulli_encoder(x, cs, log_sigmas, As)
    jax.block_until_ready(logits)

    # Pure-JAX reference, following the PyTorch forward exactly.
    inv_sigmas_ref = 0.5 * jnp.exp(-2.0 * log_sigmas)          # (1, N)
    etas = -(x ** 2) @ inv_sigmas_ref                          # (B, T, N)
    etas2 = 2.0 * x @ (cs * inv_sigmas_ref)                    # (B, T, N)
    etas3 = -(cs ** 2) * inv_sigmas_ref + jnp.log(As)          # (1, N)
    ref = etas + etas2 + etas3

    assert logits.shape == (B, T, N)
    assert jnp.allclose(logits, ref, rtol=1e-4, atol=1e-4)

    print("KERNEL_OK")
</pallas_src>

<mosaic_0001>
module attributes {stable_mosaic.version = 11 : i64} {
  func.func @bernoulli_encoder_kernel(%arg0: i32, %arg1: memref<1x16xf32, #tpu.memory_space<vmem>>, %arg2: memref<16x1xf32, #tpu.memory_space<vmem>>, %arg3: memref<16x1xf32, #tpu.memory_space<vmem>>, %arg4: memref<16x1xf32, #tpu.memory_space<vmem>>, %arg5: memref<16x16xf32, #tpu.memory_space<vmem>>) attributes {dimension_semantics = [#tpu.dimension_semantics<parallel>], iteration_bounds = array<i64: 1>, scalar_prefetch = 0 : i64, scratch_operands = 0 : i64, tpu.core_type = #tpu.core_type<tc>, window_params = [{transform_indices = @transform_0, window_bounds = array<i64: 1, 16>}, {pipeline_mode = #tpu.pipeline_mode<synchronous>, transform_indices = @transform_1, window_bounds = array<i64: 16, 1>}, {pipeline_mode = #tpu.pipeline_mode<synchronous>, transform_indices = @transform_2, window_bounds = array<i64: 16, 1>}, {pipeline_mode = #tpu.pipeline_mode<synchronous>, transform_indices = @transform_3, window_bounds = array<i64: 16, 1>}, {transform_indices = @transform_4, window_bounds = array<i64: 16, 16>}]} {
    %c0 = arith.constant 0 : index
    %c0_0 = arith.constant 0 : index
    %0 = vector.load %arg1[%c0, %c0_0] : memref<1x16xf32, #tpu.memory_space<vmem>>, vector<1x16xf32>
    %c0_1 = arith.constant 0 : index
    %c0_2 = arith.constant 0 : index
    %1 = vector.load %arg4[%c0_1, %c0_2] : memref<16x1xf32, #tpu.memory_space<vmem>>, vector<16x1xf32>
    %c0_3 = arith.constant 0 : index
    %c0_4 = arith.constant 0 : index
    %2 = vector.load %arg3[%c0_3, %c0_4] : memref<16x1xf32, #tpu.memory_space<vmem>>, vector<16x1xf32>
    %3 = vector.broadcast %2 : vector<16x1xf32> to vector<16x16xf32>
    %4 = vector.broadcast %0 : vector<1x16xf32> to vector<16x16xf32>
    %5 = arith.mulf %3, %4 : vector<16x16xf32>
    %6 = vector.broadcast %1 : vector<16x1xf32> to vector<16x16xf32>
    %7 = arith.addf %6, %5 : vector<16x16xf32>
    %c0_5 = arith.constant 0 : index
    %c0_6 = arith.constant 0 : index
    %8 = vector.load %arg2[%c0_5, %c0_6] : memref<16x1xf32, #tpu.memory_space<vmem>>, vector<16x1xf32>
    %9 = arith.mulf %0, %0 : vector<1x16xf32>
    %10 = vector.broadcast %8 : vector<16x1xf32> to vector<16x16xf32>
    %11 = vector.broadcast %9 : vector<1x16xf32> to vector<16x16xf32>
    %12 = arith.mulf %10, %11 : vector<16x16xf32>
    %13 = arith.subf %7, %12 : vector<16x16xf32>
    %c0_7 = arith.constant 0 : index
    %c0_8 = arith.constant 0 : index
    %14 = vector.load %arg5[%c0_7, %c0_8] : memref<16x16xf32, #tpu.memory_space<vmem>>, vector<16x16xf32>
    tpu.vector_store %arg5[%c0_7, %c0_8], %13 {strides = array<i32>} : memref<16x16xf32, #tpu.memory_space<vmem>>, vector<16x16xf32>,
    return
  }
  func.func @transform_0(%arg0: i32) -> (i32, i32) {
    %c0_i32 = arith.constant 0 : i32
    %c0_i32_0 = arith.constant 0 : i32
    return %c0_i32, %arg0 : i32, i32
  }
  func.func @transform_1(%arg0: i32) -> (i32, i32) {
    %c0_i32 = arith.constant 0 : i32
    %c0_i32_0 = arith.constant 0 : i32
    %c0_i32_1 = arith.constant 0 : i32
    return %c0_i32, %c0_i32_0 : i32, i32
  }
  func.func @transform_2(%arg0: i32) -> (i32, i32) {
    %c0_i32 = arith.constant 0 : i32
    %c0_i32_0 = arith.constant 0 : i32
    %c0_i32_1 = arith.constant 0 : i32
    return %c0_i32, %c0_i32_0 : i32, i32
  }
  func.func @transform_3(%arg0: i32) -> (i32, i32) {
    %c0_i32 = arith.constant 0 : i32
    %c0_i32_0 = arith.constant 0 : i32
    %c0_i32_1 = arith.constant 0 : i32
    return %c0_i32, %c0_i32_0 : i32, i32
  }
  func.func @transform_4(%arg0: i32) -> (i32, i32) {
    %c0_i32 = arith.constant 0 : i32
    %c0_i32_0 = arith.constant 0 : i32
    return %c0_i32, %arg0 : i32, i32
  }
}

</mosaic_0001>

<llo_original>
// kernel: tpu_custom_call.1
$region0: #{tpu_custom_call.1}
  #allocation0 [shape = 'u32[]', space=smem, size = 0x4, offset = 0x4, fixed_abs, tag = 'smem constant byte address 0x4 - core index']
  #allocation1 [shape = 'u32[144,128]{1,0:T(1,128)}', space=vmem, size = 0x12000, scoped, tag = 'internal scratch']
  %s0 = inlined_call_operand.vmem [shape: f32[1,16], index: 0, kind: input, shape index: {}]
  %s1 = inlined_call_operand.vmem [shape: f32[16,1], index: 1, kind: input, shape index: {}]
  %s2 = inlined_call_operand.vmem [shape: f32[16,1], index: 2, kind: input, shape index: {}]
  %s3 = inlined_call_operand.vmem [shape: f32[16,1], index: 3, kind: input, shape index: {}]
  %s4 = inlined_call_operand.hbm [shape: f32[16,16], index: 4, kind: output, shape index: {}]
  %s5 = sld [smem:[#allocation0]]
  $region26: #{tpu_custom_call.1} parent=0
    _
  %s7 = ssub.s32 1, %s5
  %s8 = scalar_select 0, %s7, %s5
  $region1: #{tpu_custom_call.1} parent=0
    #allocation2 [shape = 'u8[8192]{0}', space=vmem, size = 0x2000, scoped, tag = 'output window, operand 0, single buffered']
    #allocation3 [shape = 's32[1]{0}', space=sflag, size = 0x4, scoped, tag = 'scoped memory for tpu_custom_call.1']
    %9 = vsyncpa [#allocation3], 0
    // Predicated region
    $region2: #{tpu_custom_call.1} parent=1 // pred_check
      _
    $region3: #{tpu_custom_call.1} parent=1 // pred_check_branch
      %11 = sbr.rel (0) target = $region5
    $region4: #{tpu_custom_call.1} parent=1 // pred_region
      _
    $region5: #{tpu_custom_call.1} parent=1 // pred_fallthru
      _
    // Predicated region
    $region6: #{tpu_custom_call.1} parent=1 // pred_check
      _
    $region7: #{tpu_custom_call.1} parent=1 // pred_check_branch
      %13 = sbr.rel (0) target = $region9
    $region8: #{tpu_custom_call.1} parent=1 // pred_region
      _
    $region9: #{tpu_custom_call.1} parent=1 // pred_fallthru
      _
    // Predicated region
    $region10: #{tpu_custom_call.1} parent=1 // pred_check
      _
    $region11: #{tpu_custom_call.1} parent=1 // pred_check_branch
      %15 = sbr.rel (0) target = $region13
    $region12: #{tpu_custom_call.1} parent=1 // pred_region
      _
    $region13: #{tpu_custom_call.1} parent=1 // pred_fallthru
      _
    // Predicated region
    $region14: #{tpu_custom_call.1} parent=1 // pred_check
      _
    $region15: #{tpu_custom_call.1} parent=1 // pred_check_branch
      %17 = sbr.rel (0) target = $region17
    $region16: #{tpu_custom_call.1} parent=1 // pred_region
      _
    $region17: #{tpu_custom_call.1} parent=1 // pred_fallthru
      _
    %v18 = vld [vmem:[%s0] sm:$0x1]
    %v19 = vld [vmem:[%s3] sm:$0xff]
    %v20 = vld [vmem:[%s3 + $0x8] sm:$0xff]
    %v21 = vld [vmem:[%s2] sm:$0xff]
    %v22 = vld [vmem:[%s2 + $0x8] sm:$0xff]
    %24 = vset.pattern.permute.xlu0 0
    %25 = vperm.xlu0 %24, %v21
    %v26 = vpop.permute.xlu0 %25
    %29 = vset.pattern.permute.xlu0 0
    %30 = vperm.xlu0 %29, %v22
    %v31 = vpop.permute.xlu0 %30
    %v34 = vlaneseq
    %v35 = vshrl.u32 %v34, 7
    %v36 = vsub.s32 0, %v35
    %v37 = vrot.slane %v18, %v36
    %v39 = vmul.f32 %v26, %v37
    %v40 = vmul.f32 %v31, %v37
    %42 = vset.pattern.permute.xlu0 0
    %43 = vperm.xlu0 %42, %v19
    %v44 = vpop.permute.xlu0 %43
    %47 = vset.pattern.permute.xlu0 0
    %48 = vperm.xlu0 %47, %v20
    %v49 = vpop.permute.xlu0 %48
    %v51 = vadd.f32 %v44, %v39
    %v52 = vadd.f32 %v49, %v40
    %v53 = vld [vmem:[%s1] sm:$0xff]
    %v54 = vld [vmem:[%s1 + $0x8] sm:$0xff]
    %v55 = vmul.f32 %v18, %v18
    %57 = vset.pattern.permute.xlu0 0
    %58 = vperm.xlu0 %57, %v53
    %v59 = vpop.permute.xlu0 %58
    %62 = vset.pattern.permute.xlu0 0
    %63 = vperm.xlu0 %62, %v54
    %v64 = vpop.permute.xlu0 %63
    %v67 = vlaneseq
    %v68 = vshrl.u32 %v67, 7
    %v69 = vsub.s32 0, %v68
    %v70 = vrot.slane %v55, %v69
    %v72 = vmul.f32 %v59, %v70
    %v73 = vmul.f32 %v64, %v70
    %v74 = vsub.f32 %v51, %v72
    %v75 = vsub.f32 %v52, %v73
    %vm76 = vcmask 130048
    %77 = vst.msk [vmem:[#allocation2] sm:$0xff] %vm76, %v74
    %78 = vst.msk [vmem:[#allocation2 + $0x8] sm:$0xff] %vm76, %v75
    // Predicated region
    $region18: #{tpu_custom_call.1} parent=1 // pred_check
      _
    $region19: #{tpu_custom_call.1} parent=1 // pred_check_branch
      %80 = sbr.rel (0) target = $region21
    $region20: #{tpu_custom_call.1} parent=1 // pred_region
      %s82 = ssub.s32 256, 256
      %83 = vsyncadd [#allocation3], %s82
      %s84 = sshll.u32 [#allocation2], 4
      %s85 = int_to_ptr.vmem [resolvable:$true] %s84
      %90 = dma.vmem_to_hbm [thread:$0]  %s85, 256, %s4, [#allocation3], 128, 128, 8
    $region21: #{tpu_custom_call.1} parent=1 // pred_fallthru
      _
    // Predicated region
    $region22: #{tpu_custom_call.1} parent=1 // pred_check
      _
    $region23: #{tpu_custom_call.1} parent=1 // pred_check_branch
      %92 = sbr.rel (0) target = $region25
    $region24: #{tpu_custom_call.1} parent=1 // pred_region
      %93 = dma.done [#allocation3], 256
    $region25: #{tpu_custom_call.1} parent=1 // pred_fallthru
      _
    %94 = vsyncpa [#allocation3], 1

</llo_original>
